<compile_context>
chip_gen: v5e
topology: v5e:2x2
jax: 0.10.0
libtpu: 0.0.40
codegen_flags: <defaults>
</compile_context>

<pallas_src>
import jax
import jax.numpy as jnp
from jax.experimental import pallas as pl
from jax.experimental.pallas import tpu as pltpu

# ----------------------------- config (small) -------------------------------
HIDDEN = 32              # config.hidden_size
SELECT_LAYERS = 2        # select_layers_len (only ==2 is dim-consistent with the bug)
NUM_LABELS = 5
BATCH = 2
SEQ = 8

D_IN = HIDDEN * SELECT_LAYERS     # dense in/out features = 64
LANE = 128                        # lane-padded logits width


# ------------------------------- Pallas kernel ------------------------------
def _make_head_kernel(precision):
    """Fused head: (folded) dense -> LeakyReLU(0.01) -> out_proj (lane-padded)."""

    def head_kernel(x_ref, w1_ref, w2_ref, bias_ref, o_ref):
        # x_ref   : [B, H]        CLS rows only
        # w1_ref  : [H, D_IN]     dense weight with the self-concat folded in
        # w2_ref  : [D_IN, 128]   out_proj weight, zero-padded on the lane axis
        # bias_ref: [2, 128] f32  row 0 = dense bias (padded), row 1 = out_proj bias (padded)
        # o_ref   : [B, 128]      CLS-only, lane-dense output
        d_in = w1_ref.shape[1]
        h = jnp.dot(x_ref[...], w1_ref[...],
                    preferred_element_type=jnp.float32, precision=precision)
        h = h + bias_ref[0:1, :d_in]
        h = jnp.where(h > 0.0, h, 0.01 * h)        # LeakyReLU(0.01), kept in f32
        h = h.astype(w2_ref.dtype)                 # MXU operand dtype for 2nd matmul
        y = jnp.dot(h, w2_ref[...],
                    preferred_element_type=jnp.float32, precision=precision)
        o_ref[...] = (y + bias_ref[1:2, :]).astype(o_ref.dtype)

    return head_kernel


def electra_cls_head(last_hidden_states, w1_eff, w2_pad, bias2, num_labels):
    """logits = out_proj(LeakyReLU(dense(cat(cls, cls))))  using the last layer."""
    b = last_hidden_states.shape[0]
    lane = w2_pad.shape[1]

    # CLS rows only: S× less HBM->VMEM read traffic than streaming every row.
    cls = last_hidden_states[:, 0, :].astype(w1_eff.dtype)

    precision = (jax.lax.Precision.HIGHEST
                 if w1_eff.dtype == jnp.float32 else None)

    vmem = pl.BlockSpec(memory_space=pltpu.MemorySpace.VMEM)
    out = pl.pallas_call(
        _make_head_kernel(precision),
        out_shape=jax.ShapeDtypeStruct((b, lane), jnp.float32),
        in_specs=[vmem, vmem, vmem, vmem],
        out_specs=vmem,
        # Gridless: whole problem is VMEM resident -> no pipelining needed.
    )(cls, w1_eff, w2_pad, bias2)

    # Drop lane padding.  Padded columns are exactly zero (zero-padded w2/bias)
    # but must never be consumed downstream — keep this slice.
    return out[:, :num_labels]


# ------------------------- one-time parameter prep ---------------------------
def prepare_params(w_dense, b_dense, w_out, b_out, hidden, lane=LANE,
                   compute_dtype=jnp.float32):
    """Fold the buggy self-concat into `dense`; lane-pad `out_proj`; stack biases.

    compute_dtype=jnp.bfloat16 enables the bf16 MXU-operand path (v6e/v7x);
    biases stay f32 and are added to the f32 accumulator inside the kernel.
    """
    d_in = w_dense.shape[1]
    n_labels = w_out.shape[1]

    # cat(c, c) @ W1 + b1 == c @ (W1[:H] + W1[H:]) + b1
    w1_eff = (w_dense[:hidden, :] + w_dense[hidden:, :]).astype(compute_dtype)  # [H, D_IN]

    w2_pad = jnp.zeros((d_in, lane), compute_dtype)
    w2_pad = w2_pad.at[:, :n_labels].set(w_out.astype(compute_dtype))           # [D_IN, 128]

    # Single bias operand: row 0 = dense bias (lane-padded), row 1 = out_proj bias.
    bias2 = jnp.zeros((2, lane), jnp.float32)
    bias2 = bias2.at[0, :d_in].set(b_dense[0])
    bias2 = bias2.at[1, :n_labels].set(b_out[0])                                # [2, 128]

    return w1_eff, w2_pad, bias2


# ------------------------ pure-JAX reference (torch-literal) -----------------
def reference_forward(hidden_states_per_layer, w_dense, b_dense, w_out, b_out):
    out = None
    for i in range(SELECT_LAYERS):
        cls_i = hidden_states_per_layer[i][:, 0, :]          # [B, H]
        if i == 0:
            out = cls_i
        else:
            out = jnp.concatenate((cls_i, cls_i), axis=1)    # torch bug reproduced
    x = out                                                  # dropout(eval) = id
    h = jnp.dot(x, w_dense, precision=jax.lax.Precision.HIGHEST) + b_dense[0]
    h = jnp.where(h > 0.0, h, 0.01 * h)                      # LeakyReLU(0.01)
    # dropout(eval) = id
    return jnp.dot(h, w_out, precision=jax.lax.Precision.HIGHEST) + b_out[0]


# ---------------------------------- main -------------------------------------
if __name__ == "__main__":
    key = jax.random.PRNGKey(0)
    k_hs, k_w1, k_b1, k_w2, k_b2 = jax.random.split(key, 5)

    # Synthetic ELECTRA per-layer hidden states (stand-in for the backbone),
    # one [B, S, H] tensor per selected layer.
    hs = jax.random.normal(k_hs, (SELECT_LAYERS, BATCH, SEQ, HIDDEN), jnp.float32)
    hidden_states_per_layer = [hs[i] for i in range(SELECT_LAYERS)]

    # Head parameters, stored [in_features, out_features].
    w_dense = jax.random.normal(k_w1, (D_IN, D_IN), jnp.float32) * 0.05
    b_dense = jax.random.normal(k_b1, (1, D_IN), jnp.float32) * 0.05
    w_out = jax.random.normal(k_w2, (D_IN, NUM_LABELS), jnp.float32) * 0.05
    b_out = jax.random.normal(k_b2, (1, NUM_LABELS), jnp.float32) * 0.05

    ref = reference_forward(hidden_states_per_layer, w_dense, b_dense, w_out, b_out)

    # f32 path (Precision.HIGHEST in the kernel dots -> matches the reference).
    w1_eff, w2_pad, bias2 = prepare_params(
        w_dense, b_dense, w_out, b_out, HIDDEN, compute_dtype=jnp.float32)
    logits = electra_cls_head(hidden_states_per_layer[-1], w1_eff, w2_pad, bias2,
                              NUM_LABELS)
    logits = jax.block_until_ready(logits)
    assert logits.shape == (BATCH, NUM_LABELS), logits.shape
    assert jnp.allclose(logits, ref, atol=1e-4, rtol=1e-4), (
        float(jnp.max(jnp.abs(logits - ref))))

    # bf16 operand path (v6e/v7x MXU-native; f32 accumulation + f32 LeakyReLU).
    w1_bf, w2_bf, bias2_bf = prepare_params(
        w_dense, b_dense, w_out, b_out, HIDDEN, compute_dtype=jnp.bfloat16)
    logits_bf = electra_cls_head(hidden_states_per_layer[-1], w1_bf, w2_bf,
                                 bias2_bf, NUM_LABELS)
    logits_bf = jax.block_until_ready(logits_bf)
    assert logits_bf.shape == (BATCH, NUM_LABELS), logits_bf.shape
    assert jnp.allclose(logits_bf, ref, atol=5e-2, rtol=5e-2), (
        float(jnp.max(jnp.abs(logits_bf - ref))))

    print("KERNEL_OK")
</pallas_src>

<mosaic_0001>
module attributes {stable_mosaic.version = 11 : i64} {
  func.func @head_kernel(%arg0: memref<2x32xf32, #tpu.memory_space<vmem>>, %arg1: memref<32x64xf32, #tpu.memory_space<vmem>>, %arg2: memref<64x128xf32, #tpu.memory_space<vmem>>, %arg3: memref<2x128xf32, #tpu.memory_space<vmem>>, %arg4: memref<2x128xf32, #tpu.memory_space<vmem>>) attributes {dimension_semantics = [], scalar_prefetch = 0 : i64, scratch_operands = 0 : i64, tpu.core_type = #tpu.core_type<tc>} {
    %c0 = arith.constant 0 : index
    %c0_0 = arith.constant 0 : index
    %0 = vector.load %arg0[%c0, %c0_0] : memref<2x32xf32, #tpu.memory_space<vmem>>, vector<2x32xf32>
    %c0_1 = arith.constant 0 : index
    %c0_2 = arith.constant 0 : index
    %1 = vector.load %arg1[%c0_1, %c0_2] : memref<32x64xf32, #tpu.memory_space<vmem>>, vector<32x64xf32>
    %cst = arith.constant dense<0.000000e+00> : vector<2x64xf32>
    %2 = tpu.matmul %0, %1, %cst {dimension_numbers = #tpu.dot_dimension_numbers<[1], [0], [0], [1], [0, 0, 1, 1], [], []>, precision = #tpu.contract_precision<fp32>} : vector<2x32xf32>, vector<32x64xf32>, vector<2x64xf32> -> vector<2x64xf32>
    %c0_3 = arith.constant 0 : index
    %c0_4 = arith.constant 0 : index
    %3 = vector.load %arg3[%c0_3, %c0_4] : memref<2x128xf32, #tpu.memory_space<vmem>>, vector<1x64xf32>
    %4 = vector.broadcast %3 : vector<1x64xf32> to vector<2x64xf32>
    %5 = arith.addf %2, %4 : vector<2x64xf32>
    %cst_5 = arith.constant 0.000000e+00 : f32
    %6 = vector.broadcast %cst_5 : f32 to vector<2x64xf32>
    %7 = arith.cmpf ogt, %5, %6 : vector<2x64xf32>
    %cst_6 = arith.constant 0.00999999977 : f32
    %8 = vector.broadcast %cst_6 : f32 to vector<2x64xf32>
    %9 = arith.mulf %8, %5 : vector<2x64xf32>
    %10 = arith.select %7, %5, %9 : vector<2x64xi1>, vector<2x64xf32>
    %c0_7 = arith.constant 0 : index
    %c0_8 = arith.constant 0 : index
    %11 = vector.load %arg2[%c0_7, %c0_8] : memref<64x128xf32, #tpu.memory_space<vmem>>, vector<64x128xf32>
    %cst_9 = arith.constant dense<0.000000e+00> : vector<2x128xf32>
    %12 = tpu.matmul %10, %11, %cst_9 {dimension_numbers = #tpu.dot_dimension_numbers<[1], [0], [0], [1], [0, 0, 1, 1], [], []>, precision = #tpu.contract_precision<fp32>} : vector<2x64xf32>, vector<64x128xf32>, vector<2x128xf32> -> vector<2x128xf32>
    %c1 = arith.constant 1 : index
    %c0_10 = arith.constant 0 : index
    %13 = vector.load %arg3[%c1, %c0_10] : memref<2x128xf32, #tpu.memory_space<vmem>>, vector<1x128xf32>
    %14 = vector.broadcast %13 : vector<1x128xf32> to vector<2x128xf32>
    %15 = arith.addf %12, %14 : vector<2x128xf32>
    %c0_11 = arith.constant 0 : index
    %c0_12 = arith.constant 0 : index
    %16 = vector.load %arg4[%c0_11, %c0_12] : memref<2x128xf32, #tpu.memory_space<vmem>>, vector<2x128xf32>
    tpu.vector_store %arg4[%c0_11, %c0_12], %15 {strides = array<i32>} : memref<2x128xf32, #tpu.memory_space<vmem>>, vector<2x128xf32>,
    return
  }
}

</mosaic_0001>

<llo_original>
// kernel: tpu_custom_call.1
$region0: #{tpu_custom_call.1}
  #allocation0 [shape = 'u32[]', space=smem, size = 0x4, offset = 0x4, fixed_abs, tag = 'smem constant byte address 0x4 - core index']
  #allocation1 [shape = 'u32[72,128]{1,0:T(1,128)}', space=vmem, size = 0x9000, scoped, tag = 'internal scratch']
  %s0 = inlined_call_operand.hbm [shape: f32[2,32], index: 0, kind: input, shape index: {}]
  %s1 = inlined_call_operand.hbm [shape: f32[32,64], index: 1, kind: input, shape index: {}]
  %s2 = inlined_call_operand.hbm [shape: f32[64,128], index: 2, kind: input, shape index: {}]
  %s3 = inlined_call_operand.vmem [shape: f32[2,128], index: 3, kind: input, shape index: {}]
  %s4 = inlined_call_operand.hbm [shape: f32[2,128], index: 4, kind: output, shape index: {}]
  %s5 = sld [smem:[#allocation0]]
  $region38: #{tpu_custom_call.1} parent=0
    _
  %s7 = ssub.s32 1, %s5
  %s8 = scalar_select 0, %s7, %s5
  $region1: #{tpu_custom_call.1} parent=0
    #allocation2 [shape = 'u8[1024]{0}', space=vmem, size = 0x400, scoped, tag = 'input window, operand 0, single buffered']
    #allocation3 [shape = 's32[1]{0}', space=sflag, size = 0x4, scoped, tag = 'scoped memory for tpu_custom_call.1']
    #allocation4 [shape = 's32[1]{0}', space=sflag, size = 0x4, scoped, tag = 'scoped memory for tpu_custom_call.1']
    #allocation5 [shape = 'u8[16384]{0}', space=vmem, size = 0x4000, scoped, tag = 'input window, operand 1, single buffered']
    #allocation6 [shape = 's32[1]{0}', space=sflag, size = 0x4, scoped, tag = 'scoped memory for tpu_custom_call.1']
    #allocation7 [shape = 'u8[32768]{0}', space=vmem, size = 0x8000, scoped, tag = 'input window, operand 2, single buffered']
    #allocation8 [shape = 'u8[1024]{0}', space=vmem, size = 0x400, scoped, tag = 'output window, operand 0, single buffered']
    %9 = vsyncpa [#allocation3], 0
    %10 = vsyncpa [#allocation6], 0
    %11 = vsyncpa [#allocation4], 0
    // Predicated region
    $region2: #{tpu_custom_call.1} parent=1 // pred_check
      _
    $region3: #{tpu_custom_call.1} parent=1 // pred_check_branch
      %13 = sbr.rel (0) target = $region5
    $region4: #{tpu_custom_call.1} parent=1 // pred_region
      %15 = vsyncadd [#allocation3], 0
      %s17 = sshll.u32 %s0, 4
      %s18 = int_to_ptr.hbm [resolvable:$true] %s17
      %s19 = sshll.u32 [#allocation2], 4
      %s20 = int_to_ptr.vmem [resolvable:$true] %s19
      %22 = dma.hbm_to_vmem [thread:$0]  %s18, 32, %s20, [#allocation3]
    $region5: #{tpu_custom_call.1} parent=1 // pred_fallthru
      _
    // Predicated region
    $region6: #{tpu_custom_call.1} parent=1 // pred_check
      _
    $region7: #{tpu_custom_call.1} parent=1 // pred_check_branch
      %24 = sbr.rel (0) target = $region9
    $region8: #{tpu_custom_call.1} parent=1 // pred_region
      %26 = vsyncadd [#allocation6], 0
      %s27 = sshll.u32 %s1, 4
      %s28 = int_to_ptr.hbm [resolvable:$true] %s27
      %s29 = sshll.u32 [#allocation5], 4
      %s30 = int_to_ptr.vmem [resolvable:$true] %s29
      %35 = dma.hbm_to_vmem [thread:$0]  %s28, 512, %s30, [#allocation6], 128, 128, 8
    $region9: #{tpu_custom_call.1} parent=1 // pred_fallthru
      _
    // Predicated region
    $region10: #{tpu_custom_call.1} parent=1 // pred_check
      _
    $region11: #{tpu_custom_call.1} parent=1 // pred_check_branch
      %37 = sbr.rel (0) target = $region13
    $region12: #{tpu_custom_call.1} parent=1 // pred_region
      %39 = vsyncadd [#allocation6], 0
      %s40 = sshll.u32 %s2, 4
      %s41 = int_to_ptr.hbm [resolvable:$true] %s40
      %s42 = sshll.u32 [#allocation7], 4
      %s43 = int_to_ptr.vmem [resolvable:$true] %s42
      %48 = dma.hbm_to_vmem [thread:$0]  %s41, 1024, %s43, [#allocation6], 128, 128, 8
    $region13: #{tpu_custom_call.1} parent=1 // pred_fallthru
      _
    // Predicated region
    $region14: #{tpu_custom_call.1} parent=1 // pred_check
      _
    $region15: #{tpu_custom_call.1} parent=1 // pred_check_branch
      %50 = sbr.rel (0) target = $region17
    $region16: #{tpu_custom_call.1} parent=1 // pred_region
      _
    $region17: #{tpu_custom_call.1} parent=1 // pred_fallthru
      _
    // Predicated region
    $region18: #{tpu_custom_call.1} parent=1 // pred_check
      _
    $region19: #{tpu_custom_call.1} parent=1 // pred_check_branch
      %52 = sbr.rel (0) target = $region21
    $region20: #{tpu_custom_call.1} parent=1 // pred_region
      %54 = dma.done [#allocation3], 32
    $region21: #{tpu_custom_call.1} parent=1 // pred_fallthru
      _
    // Predicated region
    $region22: #{tpu_custom_call.1} parent=1 // pred_check
      _
    $region23: #{tpu_custom_call.1} parent=1 // pred_check_branch
      %56 = sbr.rel (0) target = $region25
    $region24: #{tpu_custom_call.1} parent=1 // pred_region
      %58 = dma.done [#allocation6], 512
    $region25: #{tpu_custom_call.1} parent=1 // pred_fallthru
      _
    // Predicated region
    $region26: #{tpu_custom_call.1} parent=1 // pred_check
      _
    $region27: #{tpu_custom_call.1} parent=1 // pred_check_branch
      %60 = sbr.rel (0) target = $region29
    $region28: #{tpu_custom_call.1} parent=1 // pred_region
      %62 = dma.done [#allocation6], 1024
    $region29: #{tpu_custom_call.1} parent=1 // pred_fallthru
      _
    %v63 = vld [vmem:[#allocation2] sm:$0x3]
    %v64 = vld [vmem:[#allocation5] sm:$0xff]
    %v65 = vld [vmem:[#allocation5 + $0x8] sm:$0xff]
    %v66 = vld [vmem:[#allocation5 + $0x10] sm:$0xff]
    %v67 = vld [vmem:[#allocation5 + $0x18] sm:$0xff]
    %v68 = vld [vmem:[%s3] sm:$0x1]
    %v69 = vperm.slane %v68, 0
    %vm70 = vcmask 261120
    %v72 = vsel %vm70, %v63, 0
    %74 = vmatpush.msra.mxu0 0.0
    %75 = vmatpush.msra.mxu0 0.0
    %76 = vmatpush.msra.mxu0 0.0
    %77 = vmatpush.msra.mxu0 0.0
    %78 = vmatpush.msra.mxu0 0.0
    %79 = vmatpush.msra.mxu0 0.0
    %80 = vmatpush.msra.mxu0 0.0
    %81 = vmatpush.msra.mxu0 0.0
    %82 = vmatpush.msra.mxu0 0.0
    %83 = vmatpush.msra.mxu0 0.0
    %84 = vmatpush.msra.mxu0 0.0
    %85 = vmatpush.msra.mxu0 0.0
    %v86 = vand.u32 %v67, 4294901760
    %87 = vmatpush.msra.mxu0 %v86
    %v88 = vand.u32 %v66, 4294901760
    %89 = vmatpush.msra.mxu0 %v88
    %v90 = vand.u32 %v65, 4294901760
    %91 = vmatpush.msra.mxu0 %v90
    %v92 = vand.u32 %v64, 4294901760
    %93 = vmatpush.msra.mxu0 %v92
    %v94 = vand.u32 %v72, 4294901760
    %v95 = vsub.f32 %v72, %v94
    %v96 = vand.u32 %v95, 4294901760
    %v97 = vsub.f32 %v95, %v96
    %v98 = vand.u32 %v97, 4294901760
    %99 = vmatmul.f32.gmra.mxu0 %v98
    %v100 = vpop.f32.mrf.mxu0
    %v101 = vadd.f32 %v69, %v100
    %102 = vdwg.mxu0
    %103 = vmatpush.msra.mxu0 0.0
    %104 = vmatpush.msra.mxu0 0.0
    %105 = vmatpush.msra.mxu0 0.0
    %106 = vmatpush.msra.mxu0 0.0
    %107 = vmatpush.msra.mxu0 0.0
    %108 = vmatpush.msra.mxu0 0.0
    %109 = vmatpush.msra.mxu0 0.0
    %110 = vmatpush.msra.mxu0 0.0
    %111 = vmatpush.msra.mxu0 0.0
    %112 = vmatpush.msra.mxu0 0.0
    %113 = vmatpush.msra.mxu0 0.0
    %114 = vmatpush.msra.mxu0 0.0
    %v115 = vand.u32 %v67, 4294901760
    %v116 = vsub.f32 %v67, %v115
    %v117 = vand.u32 %v116, 4294901760
    %v118 = vsub.f32 %v116, %v117
    %v119 = vand.u32 %v118, 4294901760
    %120 = vmatpush.msra.mxu0 %v119
    %v121 = vand.u32 %v66, 4294901760
    %v122 = vsub.f32 %v66, %v121
    %v123 = vand.u32 %v122, 4294901760
    %v124 = vsub.f32 %v122, %v123
    %v125 = vand.u32 %v124, 4294901760
    %126 = vmatpush.msra.mxu0 %v125
    %v127 = vand.u32 %v65, 4294901760
    %v128 = vsub.f32 %v65, %v127
    %v129 = vand.u32 %v128, 4294901760
    %v130 = vsub.f32 %v128, %v129
    %v131 = vand.u32 %v130, 4294901760
    %132 = vmatpush.msra.mxu0 %v131
    %v133 = vand.u32 %v64, 4294901760
    %v134 = vsub.f32 %v64, %v133
    %v135 = vand.u32 %v134, 4294901760
    %v136 = vsub.f32 %v134, %v135
    %v137 = vand.u32 %v136, 4294901760
    %138 = vmatpush.msra.mxu0 %v137
    %v139 = vand.u32 %v72, 4294901760
    %140 = vmatmul.f32.gmra.mxu0 %v139
    %v141 = vpop.f32.mrf.mxu0
    %v142 = vadd.f32 %v101, %v141
    %143 = vdwg.mxu0
    %144 = vmatpush.msra.mxu0 0.0
    %145 = vmatpush.msra.mxu0 0.0
    %146 = vmatpush.msra.mxu0 0.0
    %147 = vmatpush.msra.mxu0 0.0
    %148 = vmatpush.msra.mxu0 0.0
    %149 = vmatpush.msra.mxu0 0.0
    %150 = vmatpush.msra.mxu0 0.0
    %151 = vmatpush.msra.mxu0 0.0
    %152 = vmatpush.msra.mxu0 0.0
    %153 = vmatpush.msra.mxu0 0.0
    %154 = vmatpush.msra.mxu0 0.0
    %155 = vmatpush.msra.mxu0 0.0
    %v156 = vand.u32 %v67, 4294901760
    %v157 = vsub.f32 %v67, %v156
    %158 = vmatpush.msra.mxu0 %v157
    %v159 = vand.u32 %v66, 4294901760
    %v160 = vsub.f32 %v66, %v159
    %161 = vmatpush.msra.mxu0 %v160
    %v162 = vand.u32 %v65, 4294901760
    %v163 = vsub.f32 %v65, %v162
    %164 = vmatpush.msra.mxu0 %v163
    %v165 = vand.u32 %v64, 4294901760
    %v166 = vsub.f32 %v64, %v165
    %167 = vmatpush.msra.mxu0 %v166
    %v168 = vand.u32 %v72, 4294901760
    %v169 = vsub.f32 %v72, %v168
    %170 = vmatmul.f32.gmra.mxu0 %v169
    %v171 = vpop.f32.mrf.mxu0
    %v172 = vadd.f32 %v142, %v171
    %173 = vdwg.mxu0
    %174 = vmatpush.msra.mxu0 0.0
    %175 = vmatpush.msra.mxu0 0.0
    %176 = vmatpush.msra.mxu0 0.0
    %177 = vmatpush.msra.mxu0 0.0
    %178 = vmatpush.msra.mxu0 0.0
    %179 = vmatpush.msra.mxu0 0.0
    %180 = vmatpush.msra.mxu0 0.0
    %181 = vmatpush.msra.mxu0 0.0
    %182 = vmatpush.msra.mxu0 0.0
    %183 = vmatpush.msra.mxu0 0.0
    %184 = vmatpush.msra.mxu0 0.0
    %185 = vmatpush.msra.mxu0 0.0
    %v186 = vand.u32 %v67, 4294901760
    %187 = vmatpush.msra.mxu0 %v186
    %v188 = vand.u32 %v66, 4294901760
    %189 = vmatpush.msra.mxu0 %v188
    %v190 = vand.u32 %v65, 4294901760
    %191 = vmatpush.msra.mxu0 %v190
    %v192 = vand.u32 %v64, 4294901760
    %193 = vmatpush.msra.mxu0 %v192
    %v194 = vand.u32 %v72, 4294901760
    %v195 = vsub.f32 %v72, %v194
    %v196 = vand.u32 %v195, 4294901760
    %197 = vmatmul.f32.gmra.mxu0 %v196
    %v198 = vpop.f32.mrf.mxu0
    %v199 = vadd.f32 %v172, %v198
    %200 = vdwg.mxu0
    %201 = vmatpush.msra.mxu0 0.0
    %202 = vmatpush.msra.mxu0 0.0
    %203 = vmatpush.msra.mxu0 0.0
    %204 = vmatpush.msra.mxu0 0.0
    %205 = vmatpush.msra.mxu0 0.0
    %206 = vmatpush.msra.mxu0 0.0
    %207 = vmatpush.msra.mxu0 0.0
    %208 = vmatpush.msra.mxu0 0.0
    %209 = vmatpush.msra.mxu0 0.0
    %210 = vmatpush.msra.mxu0 0.0
    %211 = vmatpush.msra.mxu0 0.0
    %212 = vmatpush.msra.mxu0 0.0
    %v213 = vand.u32 %v67, 4294901760
    %v214 = vsub.f32 %v67, %v213
    %v215 = vand.u32 %v214, 4294901760
    %216 = vmatpush.msra.mxu0 %v215
    %v217 = vand.u32 %v66, 4294901760
    %v218 = vsub.f32 %v66, %v217
    %v219 = vand.u32 %v218, 4294901760
    %220 = vmatpush.msra.mxu0 %v219
    %v221 = vand.u32 %v65, 4294901760
    %v222 = vsub.f32 %v65, %v221
    %v223 = vand.u32 %v222, 4294901760
    %224 = vmatpush.msra.mxu0 %v223
    %v225 = vand.u32 %v64, 4294901760
    %v226 = vsub.f32 %v64, %v225
    %v227 = vand.u32 %v226, 4294901760
    %228 = vmatpush.msra.mxu0 %v227
    %v229 = vand.u32 %v72, 4294901760
    %230 = vmatmul.f32.gmra.mxu0 %v229
    %v231 = vpop.f32.mrf.mxu0
    %v232 = vadd.f32 %v199, %v231
    %233 = vdwg.mxu0
    %234 = vmatpush.msra.mxu0 0.0
    %235 = vmatpush.msra.mxu0 0.0
    %236 = vmatpush.msra.mxu0 0.0
    %237 = vmatpush.msra.mxu0 0.0
    %238 = vmatpush.msra.mxu0 0.0
    %239 = vmatpush.msra.mxu0 0.0
    %240 = vmatpush.msra.mxu0 0.0
    %241 = vmatpush.msra.mxu0 0.0
    %242 = vmatpush.msra.mxu0 0.0
    %243 = vmatpush.msra.mxu0 0.0
    %244 = vmatpush.msra.mxu0 0.0
    %245 = vmatpush.msra.mxu0 0.0
    %v246 = vand.u32 %v67, 4294901760
    %247 = vmatpush.msra.mxu0 %v246
    %v248 = vand.u32 %v66, 4294901760
    %249 = vmatpush.msra.mxu0 %v248
    %v250 = vand.u32 %v65, 4294901760
    %251 = vmatpush.msra.mxu0 %v250
    %v252 = vand.u32 %v64, 4294901760
    %253 = vmatpush.msra.mxu0 %v252
    %v254 = vand.u32 %v72, 4294901760
    %255 = vmatmul.f32.gmra.mxu0 %v254
    %v256 = vpop.f32.mrf.mxu0
    %v257 = vadd.f32 %v232, %v256
    %258 = vdwg.mxu0
    %vm259 = vcmp.gt.f32.partialorder %v257, 0.0
    %v260 = vmul.f32 %v257, 0.01
    %v261 = vsel %vm259, %v257, %v260
    %v262 = vld [vmem:[#allocation7] sm:$0xff]
    %v263 = vld [vmem:[#allocation7 + $0x8] sm:$0xff]
    %v264 = vld [vmem:[#allocation7 + $0x10] sm:$0xff]
    %v265 = vld [vmem:[#allocation7 + $0x18] sm:$0xff]
    %v266 = vld [vmem:[#allocation7 + $0x20] sm:$0xff]
    %v267 = vld [vmem:[#allocation7 + $0x28] sm:$0xff]
    %v268 = vld [vmem:[#allocation7 + $0x30] sm:$0xff]
    %v269 = vld [vmem:[#allocation7 + $0x38] sm:$0xff]
    %v270 = vld [vmem:[%s3 + $0x1] sm:$0x1]
    %v271 = vperm.slane %v270, 0
    %vm272 = vcmask 523264
    %v274 = vsel %vm272, %v261, 0
    %276 = vmatpush.msra.mxu0 0.0
    %277 = vmatpush.msra.mxu0 0.0
    %278 = vmatpush.msra.mxu0 0.0
    %279 = vmatpush.msra.mxu0 0.0
    %280 = vmatpush.msra.mxu0 0.0
    %281 = vmatpush.msra.mxu0 0.0
    %282 = vmatpush.msra.mxu0 0.0
    %283 = vmatpush.msra.mxu0 0.0
    %v284 = vand.u32 %v269, 4294901760
    %285 = vmatpush.msra.mxu0 %v284
    %v286 = vand.u32 %v268, 4294901760
    %287 = vmatpush.msra.mxu0 %v286
    %v288 = vand.u32 %v267, 4294901760
    %289 = vmatpush.msra.mxu0 %v288
    %v290 = vand.u32 %v266, 4294901760
    %291 = vmatpush.msra.mxu0 %v290
    %v292 = vand.u32 %v265, 4294901760
    %293 = vmatpush.msra.mxu0 %v292
    %v294 = vand.u32 %v264, 4294901760
    %295 = vmatpush.msra.mxu0 %v294
    %v296 = vand.u32 %v263, 4294901760
    %297 = vmatpush.msra.mxu0 %v296
    %v298 = vand.u32 %v262, 4294901760
    %299 = vmatpush.msra.mxu0 %v298
    %v300 = vand.u32 %v274, 4294901760
    %v301 = vsub.f32 %v274, %v300
    %v302 = vand.u32 %v301, 4294901760
    %v303 = vsub.f32 %v301, %v302
    %v304 = vand.u32 %v303, 4294901760
    %305 = vmatmul.f32.gmra.mxu0 %v304
    %v306 = vpop.f32.mrf.mxu0
    %v307 = vadd.f32 %v271, %v306
    %308 = vdwg.mxu0
    %309 = vmatpush.msra.mxu0 0.0
    %310 = vmatpush.msra.mxu0 0.0
    %311 = vmatpush.msra.mxu0 0.0
    %312 = vmatpush.msra.mxu0 0.0
    %313 = vmatpush.msra.mxu0 0.0
    %314 = vmatpush.msra.mxu0 0.0
    %315 = vmatpush.msra.mxu0 0.0
    %316 = vmatpush.msra.mxu0 0.0
    %v317 = vand.u32 %v269, 4294901760
    %v318 = vsub.f32 %v269, %v317
    %v319 = vand.u32 %v318, 4294901760
    %v320 = vsub.f32 %v318, %v319
    %v321 = vand.u32 %v320, 4294901760
    %322 = vmatpush.msra.mxu0 %v321
    %v323 = vand.u32 %v268, 4294901760
    %v324 = vsub.f32 %v268, %v323
    %v325 = vand.u32 %v324, 4294901760
    %v326 = vsub.f32 %v324, %v325
    %v327 = vand.u32 %v326, 4294901760
    %328 = vmatpush.msra.mxu0 %v327
    %v329 = vand.u32 %v267, 4294901760
    %v330 = vsub.f32 %v267, %v329
    %v331 = vand.u32 %v330, 4294901760
    %v332 = vsub.f32 %v330, %v331
    %v333 = vand.u32 %v332, 4294901760
    %334 = vmatpush.msra.mxu0 %v333
    %v335 = vand.u32 %v266, 4294901760
    %v336 = vsub.f32 %v266, %v335
    %v337 = vand.u32 %v336, 4294901760
    %v338 = vsub.f32 %v336, %v337
    %v339 = vand.u32 %v338, 4294901760
    %340 = vmatpush.msra.mxu0 %v339
    %v341 = vand.u32 %v265, 4294901760
    %v342 = vsub.f32 %v265, %v341
    %v343 = vand.u32 %v342, 4294901760
    %v344 = vsub.f32 %v342, %v343
    %v345 = vand.u32 %v344, 4294901760
    %346 = vmatpush.msra.mxu0 %v345
    %v347 = vand.u32 %v264, 4294901760
    %v348 = vsub.f32 %v264, %v347
    %v349 = vand.u32 %v348, 4294901760
    %v350 = vsub.f32 %v348, %v349
    %v351 = vand.u32 %v350, 4294901760
    %352 = vmatpush.msra.mxu0 %v351
    %v353 = vand.u32 %v263, 4294901760
    %v354 = vsub.f32 %v263, %v353
    %v355 = vand.u32 %v354, 4294901760
    %v356 = vsub.f32 %v354, %v355
    %v357 = vand.u32 %v356, 4294901760
    %358 = vmatpush.msra.mxu0 %v357
    %v359 = vand.u32 %v262, 4294901760
    %v360 = vsub.f32 %v262, %v359
    %v361 = vand.u32 %v360, 4294901760
    %v362 = vsub.f32 %v360, %v361
    %v363 = vand.u32 %v362, 4294901760
    %364 = vmatpush.msra.mxu0 %v363
    %v365 = vand.u32 %v274, 4294901760
    %366 = vmatmul.f32.gmra.mxu0 %v365
    %v367 = vpop.f32.mrf.mxu0
    %v368 = vadd.f32 %v307, %v367
    %369 = vdwg.mxu0
    %370 = vmatpush.msra.mxu0 0.0
    %371 = vmatpush.msra.mxu0 0.0
    %372 = vmatpush.msra.mxu0 0.0
    %373 = vmatpush.msra.mxu0 0.0
    %374 = vmatpush.msra.mxu0 0.0
    %375 = vmatpush.msra.mxu0 0.0
    %376 = vmatpush.msra.mxu0 0.0
    %377 = vmatpush.msra.mxu0 0.0
    %v378 = vand.u32 %v269, 4294901760
    %v379 = vsub.f32 %v269, %v378
    %380 = vmatpush.msra.mxu0 %v379
    %v381 = vand.u32 %v268, 4294901760
    %v382 = vsub.f32 %v268, %v381
    %383 = vmatpush.msra.mxu0 %v382
    %v384 = vand.u32 %v267, 4294901760
    %v385 = vsub.f32 %v267, %v384
    %386 = vmatpush.msra.mxu0 %v385
    %v387 = vand.u32 %v266, 4294901760
    %v388 = vsub.f32 %v266, %v387
    %389 = vmatpush.msra.mxu0 %v388
    %v390 = vand.u32 %v265, 4294901760
    %v391 = vsub.f32 %v265, %v390
    %392 = vmatpush.msra.mxu0 %v391
    %v393 = vand.u32 %v264, 4294901760
    %v394 = vsub.f32 %v264, %v393
    %395 = vmatpush.msra.mxu0 %v394
    %v396 = vand.u32 %v263, 4294901760
    %v397 = vsub.f32 %v263, %v396
    %398 = vmatpush.msra.mxu0 %v397
    %v399 = vand.u32 %v262, 4294901760
    %v400 = vsub.f32 %v262, %v399
    %401 = vmatpush.msra.mxu0 %v400
    %v402 = vand.u32 %v274, 4294901760
    %v403 = vsub.f32 %v274, %v402
    %404 = vmatmul.f32.gmra.mxu0 %v403
    %v405 = vpop.f32.mrf.mxu0
    %v406 = vadd.f32 %v368, %v405
    %407 = vdwg.mxu0
    %408 = vmatpush.msra.mxu0 0.0
    %409 = vmatpush.msra.mxu0 0.0
    %410 = vmatpush.msra.mxu0 0.0
    %411 = vmatpush.msra.mxu0 0.0
    %412 = vmatpush.msra.mxu0 0.0
    %413 = vmatpush.msra.mxu0 0.0
    %414 = vmatpush.msra.mxu0 0.0
    %415 = vmatpush.msra.mxu0 0.0
    %v416 = vand.u32 %v269, 4294901760
    %417 = vmatpush.msra.mxu0 %v416
    %v418 = vand.u32 %v268, 4294901760
    %419 = vmatpush.msra.mxu0 %v418
    %v420 = vand.u32 %v267, 4294901760
    %421 = vmatpush.msra.mxu0 %v420
    %v422 = vand.u32 %v266, 4294901760
    %423 = vmatpush.msra.mxu0 %v422
    %v424 = vand.u32 %v265, 4294901760
    %425 = vmatpush.msra.mxu0 %v424
    %v426 = vand.u32 %v264, 4294901760
    %427 = vmatpush.msra.mxu0 %v426
    %v428 = vand.u32 %v263, 4294901760
    %429 = vmatpush.msra.mxu0 %v428
    %v430 = vand.u32 %v262, 4294901760
    %431 = vmatpush.msra.mxu0 %v430
    %v432 = vand.u32 %v274, 4294901760
    %v433 = vsub.f32 %v274, %v432
    %v434 = vand.u32 %v433, 4294901760
    %435 = vmatmul.f32.gmra.mxu0 %v434
    %v436 = vpop.f32.mrf.mxu0
    %v437 = vadd.f32 %v406, %v436
    %438 = vdwg.mxu0
    %439 = vmatpush.msra.mxu0 0.0
    %440 = vmatpush.msra.mxu0 0.0
    %441 = vmatpush.msra.mxu0 0.0
    %442 = vmatpush.msra.mxu0 0.0
    %443 = vmatpush.msra.mxu0 0.0
    %444 = vmatpush.msra.mxu0 0.0
    %445 = vmatpush.msra.mxu0 0.0
    %446 = vmatpush.msra.mxu0 0.0
    %v447 = vand.u32 %v269, 4294901760
    %v448 = vsub.f32 %v269, %v447
    %v449 = vand.u32 %v448, 4294901760
    %450 = vmatpush.msra.mxu0 %v449
    %v451 = vand.u32 %v268, 4294901760
    %v452 = vsub.f32 %v268, %v451
    %v453 = vand.u32 %v452, 4294901760
    %454 = vmatpush.msra.mxu0 %v453
    %v455 = vand.u32 %v267, 4294901760
    %v456 = vsub.f32 %v267, %v455
    %v457 = vand.u32 %v456, 4294901760
    %458 = vmatpush.msra.mxu0 %v457
    %v459 = vand.u32 %v266, 4294901760
    %v460 = vsub.f32 %v266, %v459
    %v461 = vand.u32 %v460, 4294901760
    %462 = vmatpush.msra.mxu0 %v461
    %v463 = vand.u32 %v265, 4294901760
    %v464 = vsub.f32 %v265, %v463
    %v465 = vand.u32 %v464, 4294901760
    %466 = vmatpush.msra.mxu0 %v465
    %v467 = vand.u32 %v264, 4294901760
    %v468 = vsub.f32 %v264, %v467
    %v469 = vand.u32 %v468, 4294901760
    %470 = vmatpush.msra.mxu0 %v469
    %v471 = vand.u32 %v263, 4294901760
    %v472 = vsub.f32 %v263, %v471
    %v473 = vand.u32 %v472, 4294901760
    %474 = vmatpush.msra.mxu0 %v473
    %v475 = vand.u32 %v262, 4294901760
    %v476 = vsub.f32 %v262, %v475
    %v477 = vand.u32 %v476, 4294901760
    %478 = vmatpush.msra.mxu0 %v477
    %v479 = vand.u32 %v274, 4294901760
    %480 = vmatmul.f32.gmra.mxu0 %v479
    %v481 = vpop.f32.mrf.mxu0
    %v482 = vadd.f32 %v437, %v481
    %483 = vdwg.mxu0
    %484 = vmatpush.msra.mxu0 0.0
    %485 = vmatpush.msra.mxu0 0.0
    %486 = vmatpush.msra.mxu0 0.0
    %487 = vmatpush.msra.mxu0 0.0
    %488 = vmatpush.msra.mxu0 0.0
    %489 = vmatpush.msra.mxu0 0.0
    %490 = vmatpush.msra.mxu0 0.0
    %491 = vmatpush.msra.mxu0 0.0
    %v492 = vand.u32 %v269, 4294901760
    %493 = vmatpush.msra.mxu0 %v492
    %v494 = vand.u32 %v268, 4294901760
    %495 = vmatpush.msra.mxu0 %v494
    %v496 = vand.u32 %v267, 4294901760
    %497 = vmatpush.msra.mxu0 %v496
    %v498 = vand.u32 %v266, 4294901760
    %499 = vmatpush.msra.mxu0 %v498
    %v500 = vand.u32 %v265, 4294901760
    %501 = vmatpush.msra.mxu0 %v500
    %v502 = vand.u32 %v264, 4294901760
    %503 = vmatpush.msra.mxu0 %v502
    %v504 = vand.u32 %v263, 4294901760
    %505 = vmatpush.msra.mxu0 %v504
    %v506 = vand.u32 %v262, 4294901760
    %507 = vmatpush.msra.mxu0 %v506
    %v508 = vand.u32 %v274, 4294901760
    %509 = vmatmul.f32.gmra.mxu0 %v508
    %v510 = vpop.f32.mrf.mxu0
    %v511 = vadd.f32 %v482, %v510
    %512 = vdwg.mxu0
    %513 = vst [vmem:[#allocation8] sm:$0x3] %v511
    // Predicated region
    $region30: #{tpu_custom_call.1} parent=1 // pred_check
      _
    $region31: #{tpu_custom_call.1} parent=1 // pred_check_branch
      %515 = sbr.rel (0) target = $region33
    $region32: #{tpu_custom_call.1} parent=1 // pred_region
      %517 = vsyncadd [#allocation4], 0
      %s519 = sshll.u32 [#allocation8], 4
      %s520 = int_to_ptr.vmem [resolvable:$true] %s519
      %s521 = sshll.u32 %s4, 4
      %s522 = int_to_ptr.hbm [resolvable:$true] %s521
      %524 = dma.vmem_to_hbm [thread:$0]  %s520, 32, %s522, [#allocation4]
    $region33: #{tpu_custom_call.1} parent=1 // pred_fallthru
      _
    // Predicated region
    $region34: #{tpu_custom_call.1} parent=1 // pred_check
      _
    $region35: #{tpu_custom_call.1} parent=1 // pred_check_branch
      %526 = sbr.rel (0) target = $region37
    $region36: #{tpu_custom_call.1} parent=1 // pred_region
      %528 = dma.done [#allocation4], 32
    $region37: #{tpu_custom_call.1} parent=1 // pred_fallthru
      _
    %529 = vsyncpa [#allocation3], 1
    %530 = vsyncpa [#allocation6], 1
    %531 = vsyncpa [#allocation4], 1

</llo_original>
